<compile_context>
chip_gen: v5e
topology: v5e:2x2
jax: 0.10.0
libtpu: 0.0.40
codegen_flags: <defaults>
</compile_context>

<pallas_src>
import functools

import jax
import jax.numpy as jnp
from jax.experimental import pallas as pl
from jax.experimental.pallas import tpu as pltpu

LANE = 128


def _round_up(x: int, m: int) -> int:
    return ((x + m - 1) // m) * m


def _make_kernel(action_dim: int):
    A = action_dim

    def kernel(x_ref, w1_ref, w2_ref, w3_ref, b_ref, out_ref):
        x = x_ref[...]                                   # [tb, S] f32
        H2 = w1_ref.shape[1]
        OUTP = out_ref.shape[1]

        b1 = b_ref[0:1, :H2]                             # [1, 2H]
        b2 = b_ref[1:2, :H2]                             # [1, 2H]
        b3 = b_ref[2:3, :OUTP]                           # [1, OUTP]

        # Fused actor||critic chain: 3 matmuls total (f32 accumulate on MXU).
        h = jnp.dot(x, w1_ref[...], preferred_element_type=jnp.float32) + b1
        h = jnp.maximum(h, 0.0)
        h = jnp.dot(h, w2_ref[...], preferred_element_type=jnp.float32) + b2
        h = jnp.maximum(h, 0.0)
        y = jnp.dot(h, w3_ref[...], preferred_element_type=jnp.float32) + b3
        # y: [tb, OUTP] with actor logits in lanes 0..A-1, critic value in
        # lane A, zeros elsewhere (W3/b3 are zero-padded).

        # Masked, numerically-stable softmax over the action lanes, written
        # in place over the full lane-dense tile (no slice/concatenate).
        lane = jax.lax.broadcasted_iota(jnp.int32, y.shape, 1)
        is_act = lane < A
        masked = jnp.where(is_act, y, jnp.float32(-1e30))
        m = jnp.max(masked, axis=-1, keepdims=True)
        e = jnp.exp(masked - m)                          # ~0 on non-action lanes
        denom = jnp.sum(e, axis=-1, keepdims=True)
        r = pl.reciprocal(denom, approx=True)            # EUP vrcp (free slot)
        r = r * (2.0 - denom * r)                        # one Newton step -> ~f32 accurate
        out_ref[...] = jnp.where(is_act, e * r, y)       # [probs | value | 0...]

    return kernel


def fuse_params(p, *, weight_dtype=jnp.float32):
    """Build the fused weights/biases once per parameter update (hoisted out of
    the per-call hot path). Returns (w1, w2, w3, biases)."""
    S, H = p["aw1"].shape
    A = p["aw3"].shape[1]
    H2 = 2 * H
    OUTP = _round_up(A + 1, LANE)                        # lane-dense output width
    f32 = jnp.float32

    w1 = jnp.concatenate([p["aw1"], p["cw1"]], axis=1)   # [S, 2H]

    zHH = jnp.zeros((H, H), f32)
    w2 = jnp.block([[p["aw2"], zHH], [zHH, p["cw2"]]])   # [2H, 2H]
    # TODO(synk): at H > 128 (v6e/v7x MXU tile) or H > 64 (v5e) the block-diag
    # W2/W3 spends MXU cycles and DMA bytes on zero blocks; split layers 2/3
    # back into per-net HxH matmuls beyond that break-even.

    # W3 zero-padded to OUTP lanes: [actor (A) | critic (1) | zeros].
    w3 = jnp.zeros((H2, OUTP), f32)
    w3 = w3.at[:H, :A].set(p["aw3"]).at[H:, A:A + 1].set(p["cw3"])

    pad = max(H2, OUTP)
    b1 = jnp.pad(jnp.concatenate([p["ab1"], p["cb1"]], axis=1), ((0, 0), (0, pad - H2)))
    b2 = jnp.pad(jnp.concatenate([p["ab2"], p["cb2"]], axis=1), ((0, 0), (0, pad - H2)))
    b3 = jnp.zeros((1, pad), f32)
    b3 = b3.at[:, :A].set(p["ab3"]).at[:, A:A + 1].set(p["cb3"])
    biases = jnp.concatenate([b1, b2, b3], axis=0)       # [3, pad] (stays f32)

    w1 = w1.astype(weight_dtype)
    w2 = w2.astype(weight_dtype)
    w3 = w3.astype(weight_dtype)
    return w1, w2, w3, biases


@functools.partial(jax.jit, static_argnames=("action_dim", "tile_b"))
def trpo_forward(x, fused, action_dim, *, tile_b: int = 2048):
    """x: [B, state_dim] f32; fused: output of fuse_params. Returns (probs, value)."""
    w1, w2, w3, biases = fused
    B, S = x.shape
    H2 = w1.shape[1]
    OUTP = w3.shape[1]
    A = action_dim

    # Batch tile: multiple of 8 sublanes, capped at tile_b. Prefer >= 2 grid
    # steps (when the batch allows) so the "parallel" axis feeds both v7x TCs.
    b8 = _round_up(B, 8)
    tb = min(_round_up(tile_b, 8), b8)
    if b8 >= 16:
        tb = min(tb, _round_up(pl.cdiv(b8, 2), 8))
    Bp = pl.cdiv(B, tb) * tb
    if Bp != B:
        x = jnp.pad(x, ((0, Bp - B), (0, 0)))
    grid = (Bp // tb,)

    kernel = _make_kernel(A)

    # Advisory cost estimate for the XLA scheduler.
    flops = 2 * Bp * (S * H2 + H2 * H2 + H2 * OUTP)
    wbytes = (w1.size + w2.size + w3.size) * w1.dtype.itemsize
    bytes_accessed = 4 * (Bp * S + biases.size + Bp * OUTP) + wbytes
    cost = pl.CostEstimate(flops=flops, transcendentals=Bp * OUTP,
                           bytes_accessed=bytes_accessed)

    # TODO(synk): pipeline_mode=pl.Buffered(1) on the resident weight/bias specs
    # would reclaim their dead second buffer (matters most on v7x's 64 MiB VMEM);
    # left default-buffered here to keep lowering maximally portable.
    out = pl.pallas_call(
        kernel,
        out_shape=jax.ShapeDtypeStruct((Bp, OUTP), jnp.float32),
        grid_spec=pltpu.PrefetchScalarGridSpec(
            num_scalar_prefetch=0,
            grid=grid,
            in_specs=[
                pl.BlockSpec((tb, S), lambda i: (i, 0)),        # x: tiled over batch
                pl.BlockSpec((S, H2), lambda i: (0, 0)),        # fused W1 (resident)
                pl.BlockSpec((H2, H2), lambda i: (0, 0)),       # fused W2 (resident)
                pl.BlockSpec((H2, OUTP), lambda i: (0, 0)),     # fused W3 (resident)
                pl.BlockSpec(biases.shape, lambda i: (0, 0)),   # packed biases
            ],
            out_specs=pl.BlockSpec((tb, OUTP), lambda i: (i, 0)),  # lane-dense out
        ),
        compiler_params=pltpu.CompilerParams(
            dimension_semantics=("parallel",),   # shard batch grid across TCs (v7x)
            vmem_limit_bytes=32 * 1024 * 1024,
        ),
        cost_estimate=cost,
    )(x, w1, w2, w3, biases)

    probs = out[:B, :A]
    value = out[:B, A:A + 1]
    return probs, value


def init_params(key, state_dim, action_dim, hidden_dim):
    """Deterministic init mimicking nn.Linear's U(-1/sqrt(fan_in), +1/sqrt(fan_in))."""
    def linear(key, fan_in, fan_out):
        kw, kb = jax.random.split(key)
        bound = 1.0 / jnp.sqrt(jnp.float32(fan_in))
        w = jax.random.uniform(kw, (fan_in, fan_out), jnp.float32, -bound, bound)
        b = jax.random.uniform(kb, (1, fan_out), jnp.float32, -bound, bound)
        return w, b

    keys = jax.random.split(key, 6)
    p = {}
    p["aw1"], p["ab1"] = linear(keys[0], state_dim, hidden_dim)
    p["aw2"], p["ab2"] = linear(keys[1], hidden_dim, hidden_dim)
    p["aw3"], p["ab3"] = linear(keys[2], hidden_dim, action_dim)
    p["cw1"], p["cb1"] = linear(keys[3], state_dim, hidden_dim)
    p["cw2"], p["cb2"] = linear(keys[4], hidden_dim, hidden_dim)
    p["cw3"], p["cb3"] = linear(keys[5], hidden_dim, 1)
    return p


def trpo_reference(x, p):
    """Pure-JAX reference matching the PyTorch module semantics."""
    h = jnp.maximum(x @ p["aw1"] + p["ab1"], 0.0)
    h = jnp.maximum(h @ p["aw2"] + p["ab2"], 0.0)
    logits = h @ p["aw3"] + p["ab3"]
    probs = jax.nn.softmax(logits, axis=-1)
    c = jnp.maximum(x @ p["cw1"] + p["cb1"], 0.0)
    c = jnp.maximum(c @ p["cw2"] + p["cb2"], 0.0)
    value = c @ p["cw3"] + p["cb3"]
    return probs, value


if __name__ == "__main__":
    # --- small, forward-consistent shapes, f32 weights, tight tolerance -----
    B, state_dim, action_dim, hidden_dim = 8, 16, 8, 32
    key = jax.random.PRNGKey(0)
    k_x, k_p = jax.random.split(key)
    x = jax.random.normal(k_x, (B, state_dim), jnp.float32)
    params = init_params(k_p, state_dim, action_dim, hidden_dim)

    fused = fuse_params(params)                # hoisted out of the hot path
    probs, value = trpo_forward(x, fused, action_dim)
    jax.block_until_ready((probs, value))

    ref_probs, ref_value = trpo_reference(x, params)
    assert probs.shape == (B, action_dim) and value.shape == (B, 1)
    assert jnp.allclose(probs, ref_probs, atol=1e-5, rtol=1e-5)
    assert jnp.allclose(value, ref_value, atol=1e-5, rtol=1e-5)
    assert jnp.allclose(jnp.sum(probs, axis=-1), 1.0, atol=1e-5)

    # --- batch that needs padding + multiple grid steps ---------------------
    B2 = 1000
    x2 = jax.random.normal(jax.random.PRNGKey(1), (B2, state_dim), jnp.float32)
    p2, v2 = trpo_forward(x2, fused, action_dim, tile_b=256)
    jax.block_until_ready((p2, v2))
    rp2, rv2 = trpo_reference(x2, params)
    assert p2.shape == (B2, action_dim) and v2.shape == (B2, 1)
    assert jnp.allclose(p2, rp2, atol=1e-5, rtol=1e-5)
    assert jnp.allclose(v2, rv2, atol=1e-5, rtol=1e-5)

    # --- production width (module default H=128) with bf16 fused weights ----
    hidden3 = 128
    params3 = init_params(jax.random.PRNGKey(2), state_dim, action_dim, hidden3)
    fused3 = fuse_params(params3, weight_dtype=jnp.bfloat16)
    B3 = 512
    x3 = jax.random.normal(jax.random.PRNGKey(3), (B3, state_dim), jnp.float32)
    p3, v3 = trpo_forward(x3, fused3, action_dim)      # >=2 grid steps -> both v7x TCs
    jax.block_until_ready((p3, v3))
    rp3, rv3 = trpo_reference(x3, params3)
    assert p3.shape == (B3, action_dim) and v3.shape == (B3, 1)
    assert jnp.allclose(p3, rp3, atol=2e-2, rtol=2e-2)
    assert jnp.allclose(v3, rv3, atol=2e-2, rtol=2e-2)
    assert jnp.allclose(jnp.sum(p3, axis=-1), 1.0, atol=1e-3)

    print("KERNEL_OK")
</pallas_src>

<mosaic_0001>
module attributes {stable_mosaic.version = 11 : i64} {
  func.func @kernel(%arg0: i32, %arg1: memref<8x16xf32, #tpu.memory_space<vmem>>, %arg2: memref<16x64xf32, #tpu.memory_space<vmem>>, %arg3: memref<64x64xf32, #tpu.memory_space<vmem>>, %arg4: memref<64x128xf32, #tpu.memory_space<vmem>>, %arg5: memref<3x128xf32, #tpu.memory_space<vmem>>, %arg6: memref<8x128xf32, #tpu.memory_space<vmem>>) attributes {dimension_semantics = [#tpu.dimension_semantics<parallel>], iteration_bounds = array<i64: 1>, scalar_prefetch = 0 : i64, scratch_operands = 0 : i64, tpu.core_type = #tpu.core_type<tc>, window_params = [{transform_indices = @transform_0, window_bounds = array<i64: 8, 16>}, {pipeline_mode = #tpu.pipeline_mode<synchronous>, transform_indices = @transform_1, window_bounds = array<i64: 16, 64>}, {pipeline_mode = #tpu.pipeline_mode<synchronous>, transform_indices = @transform_2, window_bounds = array<i64: 64, 64>}, {pipeline_mode = #tpu.pipeline_mode<synchronous>, transform_indices = @transform_3, window_bounds = array<i64: 64, 128>}, {pipeline_mode = #tpu.pipeline_mode<synchronous>, transform_indices = @transform_4, window_bounds = array<i64: 3, 128>}, {transform_indices = @transform_5, window_bounds = array<i64: 8, 128>}]} {
    %c0 = arith.constant 0 : index
    %c0_0 = arith.constant 0 : index
    %0 = vector.load %arg1[%c0, %c0_0] : memref<8x16xf32, #tpu.memory_space<vmem>>, vector<8x16xf32>
    %c0_1 = arith.constant 0 : index
    %c0_2 = arith.constant 0 : index
    %1 = vector.load %arg5[%c0_1, %c0_2] : memref<3x128xf32, #tpu.memory_space<vmem>>, vector<1x64xf32>
    %c1 = arith.constant 1 : index
    %c0_3 = arith.constant 0 : index
    %2 = vector.load %arg5[%c1, %c0_3] : memref<3x128xf32, #tpu.memory_space<vmem>>, vector<1x64xf32>
    %c2 = arith.constant 2 : index
    %c0_4 = arith.constant 0 : index
    %3 = vector.load %arg5[%c2, %c0_4] : memref<3x128xf32, #tpu.memory_space<vmem>>, vector<1x128xf32>
    %c0_5 = arith.constant 0 : index
    %c0_6 = arith.constant 0 : index
    %4 = vector.load %arg2[%c0_5, %c0_6] : memref<16x64xf32, #tpu.memory_space<vmem>>, vector<16x64xf32>
    %cst = arith.constant dense<0.000000e+00> : vector<8x64xf32>
    %5 = tpu.matmul %0, %4, %cst {dimension_numbers = #tpu.dot_dimension_numbers<[1], [0], [0], [1], [0, 0, 1, 1], [], []>} : vector<8x16xf32>, vector<16x64xf32>, vector<8x64xf32> -> vector<8x64xf32>
    %6 = vector.broadcast %1 : vector<1x64xf32> to vector<8x64xf32>
    %7 = arith.addf %5, %6 : vector<8x64xf32>
    %cst_7 = arith.constant 0.000000e+00 : f32
    %8 = vector.broadcast %cst_7 : f32 to vector<8x64xf32>
    %9 = arith.maximumf %7, %8 : vector<8x64xf32>
    %c0_8 = arith.constant 0 : index
    %c0_9 = arith.constant 0 : index
    %10 = vector.load %arg3[%c0_8, %c0_9] : memref<64x64xf32, #tpu.memory_space<vmem>>, vector<64x64xf32>
    %cst_10 = arith.constant dense<0.000000e+00> : vector<8x64xf32>
    %11 = tpu.matmul %9, %10, %cst_10 {dimension_numbers = #tpu.dot_dimension_numbers<[1], [0], [0], [1], [0, 0, 1, 1], [], []>} : vector<8x64xf32>, vector<64x64xf32>, vector<8x64xf32> -> vector<8x64xf32>
    %12 = vector.broadcast %2 : vector<1x64xf32> to vector<8x64xf32>
    %13 = arith.addf %11, %12 : vector<8x64xf32>
    %cst_11 = arith.constant 0.000000e+00 : f32
    %14 = vector.broadcast %cst_11 : f32 to vector<8x64xf32>
    %15 = arith.maximumf %13, %14 : vector<8x64xf32>
    %c0_12 = arith.constant 0 : index
    %c0_13 = arith.constant 0 : index
    %16 = vector.load %arg4[%c0_12, %c0_13] : memref<64x128xf32, #tpu.memory_space<vmem>>, vector<64x128xf32>
    %cst_14 = arith.constant dense<0.000000e+00> : vector<8x128xf32>
    %17 = tpu.matmul %15, %16, %cst_14 {dimension_numbers = #tpu.dot_dimension_numbers<[1], [0], [0], [1], [0, 0, 1, 1], [], []>} : vector<8x64xf32>, vector<64x128xf32>, vector<8x128xf32> -> vector<8x128xf32>
    %18 = vector.broadcast %3 : vector<1x128xf32> to vector<8x128xf32>
    %19 = arith.addf %17, %18 : vector<8x128xf32>
    %20 = tpu.iota {dimensions = array<i32: 1>} : vector<8x128xi32>
    %c8_i32 = arith.constant 8 : i32
    %21 = vector.broadcast %c8_i32 : i32 to vector<8x128xi32>
    %22 = arith.cmpi slt, %20, %21 : vector<8x128xi32>
    %cst_15 = arith.constant -1.000000e+30 : f32
    %23 = vector.broadcast %cst_15 : f32 to vector<8x128xf32>
    %24 = arith.select %22, %19, %23 : vector<8x128xi1>, vector<8x128xf32>
    %cst_16 = arith.constant dense<0xFF800000> : vector<8xf32>
    %25 = vector.multi_reduction <maximumf>, %24, %cst_16 [1] : vector<8x128xf32> to vector<8xf32>
    %26 = vector.shape_cast %25 : vector<8xf32> to vector<8x1xf32>
    %27 = vector.broadcast %26 : vector<8x1xf32> to vector<8x128xf32>
    %28 = arith.subf %24, %27 : vector<8x128xf32>
    %29 = math.exp %28 : vector<8x128xf32>
    %cst_17 = arith.constant dense<0.000000e+00> : vector<8xf32>
    %30 = vector.multi_reduction <add>, %29, %cst_17 [1] : vector<8x128xf32> to vector<8xf32>
    %31 = vector.shape_cast %30 : vector<8xf32> to vector<8x1xf32>
    %32 = tpu.reciprocal %31 {approx = true} : vector<8x1xf32> -> vector<8x1xf32>
    %33 = arith.mulf %31, %32 : vector<8x1xf32>
    %cst_18 = arith.constant 2.000000e+00 : f32
    %34 = vector.broadcast %cst_18 : f32 to vector<8x1xf32>
    %35 = arith.subf %34, %33 : vector<8x1xf32>
    %36 = arith.mulf %32, %35 : vector<8x1xf32>
    %37 = vector.broadcast %36 : vector<8x1xf32> to vector<8x128xf32>
    %38 = arith.mulf %29, %37 : vector<8x128xf32>
    %39 = arith.select %22, %38, %19 : vector<8x128xi1>, vector<8x128xf32>
    %c0_19 = arith.constant 0 : index
    %c0_20 = arith.constant 0 : index
    %40 = vector.load %arg6[%c0_19, %c0_20] : memref<8x128xf32, #tpu.memory_space<vmem>>, vector<8x128xf32>
    tpu.vector_store %arg6[%c0_19, %c0_20], %39 {strides = array<i32>} : memref<8x128xf32, #tpu.memory_space<vmem>>, vector<8x128xf32>,
    return
  }
  func.func @transform_0(%arg0: i32) -> (i32, i32) {
    %c0_i32 = arith.constant 0 : i32
    %c0_i32_0 = arith.constant 0 : i32
    return %arg0, %c0_i32 : i32, i32
  }
  func.func @transform_1(%arg0: i32) -> (i32, i32) {
    %c0_i32 = arith.constant 0 : i32
    %c0_i32_0 = arith.constant 0 : i32
    %c0_i32_1 = arith.constant 0 : i32
    return %c0_i32, %c0_i32_0 : i32, i32
  }
  func.func @transform_2(%arg0: i32) -> (i32, i32) {
    %c0_i32 = arith.constant 0 : i32
    %c0_i32_0 = arith.constant 0 : i32
    %c0_i32_1 = arith.constant 0 : i32
    return %c0_i32, %c0_i32_0 : i32, i32
  }
  func.func @transform_3(%arg0: i32) -> (i32, i32) {
    %c0_i32 = arith.constant 0 : i32
    %c0_i32_0 = arith.constant 0 : i32
    %c0_i32_1 = arith.constant 0 : i32
    return %c0_i32, %c0_i32_0 : i32, i32
  }
  func.func @transform_4(%arg0: i32) -> (i32, i32) {
    %c0_i32 = arith.constant 0 : i32
    %c0_i32_0 = arith.constant 0 : i32
    %c0_i32_1 = arith.constant 0 : i32
    return %c0_i32, %c0_i32_0 : i32, i32
  }
  func.func @transform_5(%arg0: i32) -> (i32, i32) {
    %c0_i32 = arith.constant 0 : i32
    %c0_i32_0 = arith.constant 0 : i32
    return %arg0, %c0_i32 : i32, i32
  }
}

</mosaic_0001>

<llo_original>
// kernel: trpo_forward.1
$region0: #{trpo_forward.1}
  #allocation0 [shape = 'u32[]', space=smem, size = 0x4, offset = 0x4, fixed_abs, tag = 'smem constant byte address 0x4 - core index']
  #allocation1 [shape = 'u32[72,128]{1,0:T(1,128)}', space=vmem, size = 0x9000, scoped, tag = 'internal scratch']
  %s0 = inlined_call_operand.hbm [shape: f32[8,16], index: 0, kind: input, shape index: {}]
  %s1 = inlined_call_operand.hbm [shape: f32[16,64], index: 1, kind: input, shape index: {}]
  %s2 = inlined_call_operand.hbm [shape: f32[64,64], index: 2, kind: input, shape index: {}]
  %s3 = inlined_call_operand.hbm [shape: f32[64,128], index: 3, kind: input, shape index: {}]
  %s4 = inlined_call_operand.hbm [shape: f32[3,128], index: 4, kind: input, shape index: {}]
  %s5 = inlined_call_operand.vmem [shape: f32[8,128], index: 5, kind: output, shape index: {}]
  %s6 = sld [smem:[#allocation0]]
  $region50: #{trpo_forward.1} parent=0
    _
  %s8 = ssub.s32 1, %s6
  %s9 = scalar_select 0, %s8, %s6
  $region1: #{trpo_forward.1} parent=0
    #allocation2 [shape = 'u8[4096]{0}', space=vmem, size = 0x1000, scoped, tag = 'input window, operand 0, single buffered']
    #allocation3 [shape = 's32[1]{0}', space=sflag, size = 0x4, scoped, tag = 'scoped memory for trpo_forward.1']
    #allocation4 [shape = 'u8[8192]{0}', space=vmem, size = 0x2000, scoped, tag = 'input window, operand 1, single buffered']
    #allocation5 [shape = 's32[1]{0}', space=sflag, size = 0x4, scoped, tag = 'scoped memory for trpo_forward.1']
    #allocation6 [shape = 'u8[32768]{0}', space=vmem, size = 0x8000, scoped, tag = 'input window, operand 2, single buffered']
    #allocation7 [shape = 'u8[32768]{0}', space=vmem, size = 0x8000, scoped, tag = 'input window, operand 3, single buffered']
    #allocation8 [shape = 's32[1]{0}', space=sflag, size = 0x4, scoped, tag = 'scoped memory for trpo_forward.1']
    #allocation9 [shape = 'u8[2048]{0}', space=vmem, size = 0x800, scoped, tag = 'input window, operand 4, single buffered']
    %10 = vsyncpa [#allocation3], 0
    %11 = vsyncpa [#allocation5], 0
    %12 = vsyncpa [#allocation8], 0
    // Predicated region
    $region2: #{trpo_forward.1} parent=1 // pred_check
      _
    $region3: #{trpo_forward.1} parent=1 // pred_check_branch
      %14 = sbr.rel (0) target = $region5
    $region4: #{trpo_forward.1} parent=1 // pred_region
      %16 = vsyncadd [#allocation3], 0
      %s18 = sshll.u32 %s0, 4
      %s19 = int_to_ptr.hbm [resolvable:$true] %s18
      %s20 = sshll.u32 [#allocation2], 4
      %s21 = int_to_ptr.vmem [resolvable:$true] %s20
      %23 = dma.hbm_to_vmem [thread:$0]  %s19, 128, %s21, [#allocation3]
    $region5: #{trpo_forward.1} parent=1 // pred_fallthru
      _
    // Predicated region
    $region6: #{trpo_forward.1} parent=1 // pred_check
      _
    $region7: #{trpo_forward.1} parent=1 // pred_check_branch
      %25 = sbr.rel (0) target = $region9
    $region8: #{trpo_forward.1} parent=1 // pred_region
      %27 = vsyncadd [#allocation5], 0
      %s28 = sshll.u32 %s1, 4
      %s29 = int_to_ptr.hbm [resolvable:$true] %s28
      %s30 = sshll.u32 [#allocation4], 4
      %s31 = int_to_ptr.vmem [resolvable:$true] %s30
      %36 = dma.hbm_to_vmem [thread:$0]  %s29, 256, %s31, [#allocation5], 128, 128, 8
    $region9: #{trpo_forward.1} parent=1 // pred_fallthru
      _
    // Predicated region
    $region10: #{trpo_forward.1} parent=1 // pred_check
      _
    $region11: #{trpo_forward.1} parent=1 // pred_check_branch
      %38 = sbr.rel (0) target = $region13
    $region12: #{trpo_forward.1} parent=1 // pred_region
      %40 = vsyncadd [#allocation5], 0
      %s41 = sshll.u32 %s2, 4
      %s42 = int_to_ptr.hbm [resolvable:$true] %s41
      %s43 = sshll.u32 [#allocation6], 4
      %s44 = int_to_ptr.vmem [resolvable:$true] %s43
      %49 = dma.hbm_to_vmem [thread:$0]  %s42, 1024, %s44, [#allocation5], 128, 128, 8
    $region13: #{trpo_forward.1} parent=1 // pred_fallthru
      _
    // Predicated region
    $region14: #{trpo_forward.1} parent=1 // pred_check
      _
    $region15: #{trpo_forward.1} parent=1 // pred_check_branch
      %51 = sbr.rel (0) target = $region17
    $region16: #{trpo_forward.1} parent=1 // pred_region
      %53 = vsyncadd [#allocation8], 0
      %s54 = sshll.u32 %s3, 4
      %s55 = int_to_ptr.hbm [resolvable:$true] %s54
      %s56 = sshll.u32 [#allocation7], 4
      %s57 = int_to_ptr.vmem [resolvable:$true] %s56
      %62 = dma.hbm_to_vmem [thread:$0]  %s55, 1024, %s57, [#allocation8], 128, 128, 8
    $region17: #{trpo_forward.1} parent=1 // pred_fallthru
      _
    // Predicated region
    $region18: #{trpo_forward.1} parent=1 // pred_check
      _
    $region19: #{trpo_forward.1} parent=1 // pred_check_branch
      %64 = sbr.rel (0) target = $region21
    $region20: #{trpo_forward.1} parent=1 // pred_region
      %66 = vsyncadd [#allocation8], 0
      %s68 = sshll.u32 %s4, 4
      %s69 = int_to_ptr.hbm [resolvable:$true] %s68
      %s70 = sshll.u32 [#allocation9], 4
      %s71 = int_to_ptr.vmem [resolvable:$true] %s70
      %73 = dma.hbm_to_vmem [thread:$0]  %s69, 64, %s71, [#allocation8]
    $region21: #{trpo_forward.1} parent=1 // pred_fallthru
      _
    // Predicated region
    $region22: #{trpo_forward.1} parent=1 // pred_check
      _
    $region23: #{trpo_forward.1} parent=1 // pred_check_branch
      %75 = sbr.rel (0) target = $region25
    $region24: #{trpo_forward.1} parent=1 // pred_region
      %77 = dma.done [#allocation3], 128
    $region25: #{trpo_forward.1} parent=1 // pred_fallthru
      _
    // Predicated region
    $region26: #{trpo_forward.1} parent=1 // pred_check
      _
    $region27: #{trpo_forward.1} parent=1 // pred_check_branch
      %79 = sbr.rel (0) target = $region29
    $region28: #{trpo_forward.1} parent=1 // pred_region
      %81 = dma.done [#allocation5], 256
    $region29: #{trpo_forward.1} parent=1 // pred_fallthru
      _
    // Predicated region
    $region30: #{trpo_forward.1} parent=1 // pred_check
      _
    $region31: #{trpo_forward.1} parent=1 // pred_check_branch
      %83 = sbr.rel (0) target = $region33
    $region32: #{trpo_forward.1} parent=1 // pred_region
      %85 = dma.done [#allocation5], 1024
    $region33: #{trpo_forward.1} parent=1 // pred_fallthru
      _
    // Predicated region
    $region34: #{trpo_forward.1} parent=1 // pred_check
      _
    $region35: #{trpo_forward.1} parent=1 // pred_check_branch
      %87 = sbr.rel (0) target = $region37
    $region36: #{trpo_forward.1} parent=1 // pred_region
      %89 = dma.done [#allocation8], 1024
    $region37: #{trpo_forward.1} parent=1 // pred_fallthru
      _
    // Predicated region
    $region38: #{trpo_forward.1} parent=1 // pred_check
      _
    $region39: #{trpo_forward.1} parent=1 // pred_check_branch
      %91 = sbr.rel (0) target = $region41
    $region40: #{trpo_forward.1} parent=1 // pred_region
      %93 = dma.done [#allocation8], 64
    $region41: #{trpo_forward.1} parent=1 // pred_fallthru
      _
    %v94 = vld [vmem:[#allocation2] sm:$0xff]
    %v95 = vld [vmem:[#allocation9] sm:$0x1]
    %v96 = vld [vmem:[#allocation9 + $0x1] sm:$0x1]
    %v97 = vld [vmem:[#allocation9 + $0x2] sm:$0x1]
    %v98 = vld [vmem:[#allocation4] sm:$0xff]
    %v99 = vld [vmem:[#allocation4 + $0x8] sm:$0xff]
    %v100 = vperm.slane %v95, 0
    %vm101 = vcmask 130048
    %v103 = vsel %vm101, %v94, 0
    %105 = vmatpush.msra.mxu0 0.0
    %106 = vmatpush.msra.mxu0 0.0
    %107 = vmatpush.msra.mxu0 0.0
    %108 = vmatpush.msra.mxu0 0.0
    %109 = vmatpush.msra.mxu0 0.0
    %110 = vmatpush.msra.mxu0 0.0
    %111 = vmatpush.msra.mxu0 0.0
    %112 = vmatpush.msra.mxu0 0.0
    %113 = vmatpush.msra.mxu0 0.0
    %114 = vmatpush.msra.mxu0 0.0
    %115 = vmatpush.msra.mxu0 0.0
    %116 = vmatpush.msra.mxu0 0.0
    %117 = vmatpush.msra.mxu0 0.0
    %118 = vmatpush.msra.mxu0 0.0
    %119 = vmatpush.msra.mxu0 %v99
    %120 = vmatpush.msra.mxu0 %v98
    %121 = vmatmul.f32.gmra.mxu0 %v103
    %v122 = vpop.f32.mrf.mxu0
    %v123 = vadd.f32 %v100, %v122
    %124 = vdwg.mxu0
    %v125 = vmax.f32 %v123, 0.0
    %v126 = vld [vmem:[#allocation6] sm:$0xff]
    %v127 = vld [vmem:[#allocation6 + $0x8] sm:$0xff]
    %v128 = vld [vmem:[#allocation6 + $0x10] sm:$0xff]
    %v129 = vld [vmem:[#allocation6 + $0x18] sm:$0xff]
    %v130 = vld [vmem:[#allocation6 + $0x20] sm:$0xff]
    %v131 = vld [vmem:[#allocation6 + $0x28] sm:$0xff]
    %v132 = vld [vmem:[#allocation6 + $0x30] sm:$0xff]
    %v133 = vld [vmem:[#allocation6 + $0x38] sm:$0xff]
    %v134 = vperm.slane %v96, 0
    %vm135 = vcmask 523264
    %v137 = vsel %vm135, %v125, 0
    %139 = vmatpush.msra.mxu0 0.0
    %140 = vmatpush.msra.mxu0 0.0
    %141 = vmatpush.msra.mxu0 0.0
    %142 = vmatpush.msra.mxu0 0.0
    %143 = vmatpush.msra.mxu0 0.0
    %144 = vmatpush.msra.mxu0 0.0
    %145 = vmatpush.msra.mxu0 0.0
    %146 = vmatpush.msra.mxu0 0.0
    %147 = vmatpush.msra.mxu0 %v133
    %148 = vmatpush.msra.mxu0 %v132
    %149 = vmatpush.msra.mxu0 %v131
    %150 = vmatpush.msra.mxu0 %v130
    %151 = vmatpush.msra.mxu0 %v129
    %152 = vmatpush.msra.mxu0 %v128
    %153 = vmatpush.msra.mxu0 %v127
    %154 = vmatpush.msra.mxu0 %v126
    %155 = vmatmul.f32.gmra.mxu0 %v137
    %v156 = vpop.f32.mrf.mxu0
    %v157 = vadd.f32 %v134, %v156
    %158 = vdwg.mxu0
    %v159 = vmax.f32 %v157, 0.0
    %v160 = vld [vmem:[#allocation7] sm:$0xff]
    %v161 = vld [vmem:[#allocation7 + $0x8] sm:$0xff]
    %v162 = vld [vmem:[#allocation7 + $0x10] sm:$0xff]
    %v163 = vld [vmem:[#allocation7 + $0x18] sm:$0xff]
    %v164 = vld [vmem:[#allocation7 + $0x20] sm:$0xff]
    %v165 = vld [vmem:[#allocation7 + $0x28] sm:$0xff]
    %v166 = vld [vmem:[#allocation7 + $0x30] sm:$0xff]
    %v167 = vld [vmem:[#allocation7 + $0x38] sm:$0xff]
    %v168 = vperm.slane %v97, 0
    %v170 = vsel %vm135, %v159, 0
    %172 = vmatpush.msra.mxu0 0.0
    %173 = vmatpush.msra.mxu0 0.0
    %174 = vmatpush.msra.mxu0 0.0
    %175 = vmatpush.msra.mxu0 0.0
    %176 = vmatpush.msra.mxu0 0.0
    %177 = vmatpush.msra.mxu0 0.0
    %178 = vmatpush.msra.mxu0 0.0
    %179 = vmatpush.msra.mxu0 0.0
    %180 = vmatpush.msra.mxu0 %v167
    %181 = vmatpush.msra.mxu0 %v166
    %182 = vmatpush.msra.mxu0 %v165
    %183 = vmatpush.msra.mxu0 %v164
    %184 = vmatpush.msra.mxu0 %v163
    %185 = vmatpush.msra.mxu0 %v162
    %186 = vmatpush.msra.mxu0 %v161
    %187 = vmatpush.msra.mxu0 %v160
    %188 = vmatmul.f32.gmra.mxu0 %v170
    %v189 = vpop.f32.mrf.mxu0
    %v190 = vadd.f32 %v168, %v189
    %191 = vdwg.mxu0
    %v192 = vlaneseq
    %v193 = vand.u32 %v192, 127
    %vm194 = vcmp.lt.s32.totalorder %v193, 8
    %v195 = vsel %vm194, %v190, -1e+30
    %196 = vmax.xlane.f32.xlu0 %v195
    %v197 = vpop.xlane.xlu0 %196
    %v198 = vsub.f32 %v195, %v197
    %v199 = vmul.f32 %v198, 1.442695
    %v200 = vpow.pop %v199
    %201 = vadd.xlane.f32.xlu0 %v200
    %v202 = vpop.xlane.xlu0 %201
    %v203 = vrcp.pop %v202
    %v204 = vmul.f32 %v202, %v203
    %v205 = vsub.f32 2.0, %v204
    %v206 = vmul.f32 %v203, %v205
    %v207 = vmul.f32 %v200, %v206
    %v208 = vsel %vm194, %v207, %v190
    %209 = vst [vmem:[%s5] sm:$0xff] %v208
    // Predicated region
    $region42: #{trpo_forward.1} parent=1 // pred_check
      _
    $region43: #{trpo_forward.1} parent=1 // pred_check_branch
      %211 = sbr.rel (0) target = $region45
    $region44: #{trpo_forward.1} parent=1 // pred_region
      _
    $region45: #{trpo_forward.1} parent=1 // pred_fallthru
      _
    // Predicated region
    $region46: #{trpo_forward.1} parent=1 // pred_check
      _
    $region47: #{trpo_forward.1} parent=1 // pred_check_branch
      %213 = sbr.rel (0) target = $region49
    $region48: #{trpo_forward.1} parent=1 // pred_region
      _
    $region49: #{trpo_forward.1} parent=1 // pred_fallthru
      _
    %214 = vsyncpa [#allocation3], 1
    %215 = vsyncpa [#allocation5], 1
    %216 = vsyncpa [#allocation8], 1

</llo_original>
